<compile_context>
chip_gen: v5e
topology: v5e:2x2
jax: 0.10.0
libtpu: 0.0.40
codegen_flags: <defaults>
</compile_context>

<pallas_src>
import functools

import jax
import jax.numpy as jnp
from jax.experimental import pallas as pl
from jax.experimental.pallas import tpu as pltpu


def _weighted_iou_kernel(x_ref, t_ref, iou_ref, inter_acc, union_acc, *,
                         pos_w, neg_w, n_rows,
                         mask_rows, mask_cols, last_tile_valid_cols):
    i = pl.program_id(0)          # row-tile index ("parallel")
    j = pl.program_id(1)          # column-tile index (reduction, innermost)
    n_j = pl.num_programs(1)

    @pl.when(j == 0)
    def _():
        inter_acc[...] = jnp.zeros_like(inter_acc)
        union_acc[...] = jnp.zeros_like(union_acc)

    x = x_ref[...].astype(jnp.float32)
    t = t_ref[...].astype(jnp.float32)

    # Numerically-stable sigmoid with a single reciprocal (exp -> EUP slot).
    e = jnp.exp(-jnp.abs(x))
    s = 1.0 / (1.0 + e)
    p = jnp.where(x >= 0, s, 1.0 - s)

    w = neg_w + t * (pos_w - neg_w)          # (pos_w - neg_w) folded at trace time
    wpt = w * p * t
    inter_c = wpt
    union_c = w * (p + t) - wpt

    def _accumulate(ic, uc):
        # Cross-lane reduce into tiny (TR, 1) accumulators (XLU slot; no
        # full-tile scratch round trips in the hot loop).
        inter_acc[...] += jnp.sum(ic, axis=1, keepdims=True)
        union_acc[...] += jnp.sum(uc, axis=1, keepdims=True)

    if mask_cols:
        # Only the last column tile overruns L; its tail holds unspecified
        # data so both terms are select-masked (select also kills NaNs).
        @pl.when(j < n_j - 1)
        def _():
            _accumulate(inter_c, union_c)

        @pl.when(j == n_j - 1)
        def _():
            tr, tl = inter_c.shape
            col = jax.lax.broadcasted_iota(jnp.int32, (tr, tl), 1)
            valid = col < last_tile_valid_cols
            _accumulate(jnp.where(valid, inter_c, 0.0),
                        jnp.where(valid, union_c, 0.0))
    else:
        _accumulate(inter_c, union_c)

    @pl.when(j == n_j - 1)
    def _():
        iou = inter_acc[...] / (union_acc[...] + 1e-8)           # (TR, 1)
        if mask_rows:
            tr = iou.shape[0]
            row = i * tr + jax.lax.broadcasted_iota(jnp.int32, (tr, 1), 0)
            iou = jnp.where(row < n_rows, iou, 0.0)
        iou_ref[...] = iou


def _vmem_capacity_bytes():
    try:
        info = pltpu.get_tpu_info()
        cap = getattr(info, "vmem_capacity_bytes", None)
        if cap:
            return int(cap)
    except Exception:
        pass
    return 128 * 1024 * 1024


def weighted_iou_loss(predictions, targets, pos_weight=1.0, neg_weight=1.0,
                      *, max_tile_rows=None, max_tile_cols=None):
    """Pallas TPU implementation of WeightedIoULoss.forward."""
    assert predictions.shape == targets.shape
    assert predictions.ndim == 3, "expected (batch, channels, length); module sums over dim=2"
    b, c, l = predictions.shape
    r = b * c

    # Flatten to a lane-dense (R, L) slab. Predictions keep their native
    # dtype (cast to f32 inside the kernel). Targets are exactly 0/1, so the
    # bf16 cast is lossless and halves that stream inside the kernel.
    x2 = predictions.reshape(r, l)
    t2 = targets.reshape(r, l).astype(jnp.bfloat16)

    # Generation-aware tile budget (v5e/v6e: 128 MiB VMEM, v7x: 64 MiB/TC).
    vmem_cap = _vmem_capacity_bytes()
    big_vmem = vmem_cap >= 96 * 1024 * 1024
    if max_tile_rows is None:
        max_tile_rows = 512 if big_vmem else 256
    if max_tile_cols is None:
        max_tile_cols = 4096
    # Blocked row tiles must respect the bf16 (16, 128) min tile; blocked
    # column tiles must be lane-aligned.
    max_tile_rows = max(16, (max_tile_rows // 16) * 16)
    max_tile_cols = max(128, (max_tile_cols // 128) * 128)

    # "Pick the tile, cdiv the grid" -- no jnp.pad HBM round trip. A dim that
    # fits one tile uses its exact (possibly unaligned) extent, which is legal
    # as a full-dim block and needs no masking at all.
    tile_r = r if r <= max_tile_rows else max_tile_rows
    tile_l = l if l <= max_tile_cols else max_tile_cols
    n_i = pl.cdiv(r, tile_r)
    n_j = pl.cdiv(l, tile_l)
    mask_rows = (n_i * tile_r) != r
    mask_cols = (n_j * tile_l) != l
    last_tile_valid_cols = l - (n_j - 1) * tile_l

    in_spec = pl.BlockSpec((tile_r, tile_l), lambda i, j: (i, j))

    kernel = functools.partial(
        _weighted_iou_kernel,
        pos_w=float(pos_weight),          # plain Python scalars, cache-stable
        neg_w=float(neg_weight),
        n_rows=r,
        mask_rows=mask_rows,
        mask_cols=mask_cols,
        last_tile_valid_cols=last_tile_valid_cols,
    )

    vmem_limit = max(32 * 1024 * 1024,
                     min(80 * 1024 * 1024, (vmem_cap * 6) // 10))

    iou_rows = pl.pallas_call(
        kernel,
        out_shape=jax.ShapeDtypeStruct((n_i * tile_r, 1), jnp.float32),
        grid_spec=pltpu.PrefetchScalarGridSpec(
            num_scalar_prefetch=0,
            grid=(n_i, n_j),
            in_specs=[in_spec, in_spec],
            out_specs=pl.BlockSpec((tile_r, 1), lambda i, j: (i, 0)),
            scratch_shapes=[
                pltpu.VMEM((tile_r, 1), jnp.float32),   # per-row intersection
                pltpu.VMEM((tile_r, 1), jnp.float32),   # per-row union
            ],
        ),
        compiler_params=pltpu.CompilerParams(
            dimension_semantics=("parallel", "arbitrary"),
            vmem_limit_bytes=vmem_limit,
        ),
    )(x2, t2)

    # Tiny JAX epilogue; masked pad rows contribute exactly 0 to the sum.
    return 1.0 - jnp.sum(iou_rows) / r


def _reference_loss(predictions, targets, pos_weight=1.0, neg_weight=1.0):
    p = jax.nn.sigmoid(predictions.astype(jnp.float32))
    t = targets.astype(jnp.float32)
    w = t * pos_weight + (1.0 - t) * neg_weight
    inter = jnp.sum(w * p * t, axis=2)
    union = jnp.sum(w * (p + t) - w * p * t, axis=2)
    iou = inter / (union + 1e-8)
    return 1.0 - jnp.mean(iou)


if __name__ == "__main__":
    key = jax.random.PRNGKey(0)
    k1, k2, k3, k4, k5, k6 = jax.random.split(key, 6)

    # Primary: (batch=2, channels=4, length=16) -- single full-array tile.
    preds = jax.random.normal(k1, (2, 4, 16), dtype=jnp.float32) * 2.0
    tgts = (jax.random.uniform(k2, (2, 4, 16)) > 0.7).astype(jnp.float32)
    loss = weighted_iou_loss(preds, tgts, pos_weight=2.0, neg_weight=0.5)
    jax.block_until_ready(loss)
    ref = _reference_loss(preds, tgts, pos_weight=2.0, neg_weight=0.5)
    assert jnp.allclose(loss, ref, rtol=1e-4, atol=1e-5), (loss, ref)

    # Unaligned R and L that still fit a single (full-dim) tile: no padding,
    # no masking, exercises the ragged lane handling.
    preds2 = jax.random.normal(k3, (3, 5, 2500), dtype=jnp.float32)
    tgts2 = (jax.random.uniform(k4, (3, 5, 2500)) > 0.9).astype(jnp.float32)
    loss2 = weighted_iou_loss(preds2, tgts2)
    jax.block_until_ready(loss2)
    ref2 = _reference_loss(preds2, tgts2)
    assert jnp.allclose(loss2, ref2, rtol=1e-4, atol=1e-5), (loss2, ref2)

    # Multi-tile grid with ragged row AND column edge tiles (forces the
    # edge-tile masking and cross-column-tile accumulation paths).
    preds3 = jax.random.normal(k5, (2, 20, 1300), dtype=jnp.float32)
    tgts3 = (jax.random.uniform(k6, (2, 20, 1300)) > 0.8).astype(jnp.float32)
    loss3 = weighted_iou_loss(preds3, tgts3, pos_weight=3.0, neg_weight=0.25,
                              max_tile_rows=16, max_tile_cols=512)
    jax.block_until_ready(loss3)
    ref3 = _reference_loss(preds3, tgts3, pos_weight=3.0, neg_weight=0.25)
    assert jnp.allclose(loss3, ref3, rtol=1e-4, atol=1e-5), (loss3, ref3)

    print("KERNEL_OK")
</pallas_src>

<mosaic_0001>
module attributes {stable_mosaic.version = 11 : i64} {
  func.func @_weighted_iou_kernel(%arg0: i32, %arg1: i32, %arg2: memref<8x16xf32, #tpu.memory_space<vmem>>, %arg3: memref<8x16xbf16, #tpu.memory_space<vmem>>, %arg4: memref<8x1xf32, #tpu.memory_space<vmem>>, %arg5: memref<8x1xf32, #tpu.memory_space<vmem>>, %arg6: memref<8x1xf32, #tpu.memory_space<vmem>>) attributes {dimension_semantics = [#tpu.dimension_semantics<parallel>, #tpu.dimension_semantics<arbitrary>], iteration_bounds = array<i64: 1, 1>, scalar_prefetch = 0 : i64, scratch_operands = 2 : i64, tpu.core_type = #tpu.core_type<tc>, window_params = [{transform_indices = @transform_0, window_bounds = array<i64: 8, 16>}, {transform_indices = @transform_1, window_bounds = array<i64: 8, 16>}, {transform_indices = @transform_2, window_bounds = array<i64: 8, 1>}]} {
    %c0_i32 = arith.constant 0 : i32
    %0 = arith.cmpi eq, %arg1, %c0_i32 : i32
    %1 = arith.extui %0 : i1 to i32
    %c0_i32_0 = arith.constant 0 : i32
    %2 = arith.cmpi ne, %1, %c0_i32_0 : i32
    scf.if %2 {
      %cst_22 = arith.constant 0.000000e+00 : f32
      %41 = vector.broadcast %cst_22 : f32 to vector<8x1xf32>
      %c0_23 = arith.constant 0 : index
      %c0_24 = arith.constant 0 : index
      %42 = vector.load %arg5[%c0_23, %c0_24] : memref<8x1xf32, #tpu.memory_space<vmem>>, vector<8x1xf32>
      tpu.vector_store %arg5[%c0_23, %c0_24], %41 {strides = array<i32>} : memref<8x1xf32, #tpu.memory_space<vmem>>, vector<8x1xf32>,
      %cst_25 = arith.constant 0.000000e+00 : f32
      %43 = vector.broadcast %cst_25 : f32 to vector<8x1xf32>
      %c0_26 = arith.constant 0 : index
      %c0_27 = arith.constant 0 : index
      %44 = vector.load %arg6[%c0_26, %c0_27] : memref<8x1xf32, #tpu.memory_space<vmem>>, vector<8x1xf32>
      tpu.vector_store %arg6[%c0_26, %c0_27], %43 {strides = array<i32>} : memref<8x1xf32, #tpu.memory_space<vmem>>, vector<8x1xf32>,
    } else {
    }
    %c0 = arith.constant 0 : index
    %c0_1 = arith.constant 0 : index
    %3 = vector.load %arg2[%c0, %c0_1] : memref<8x16xf32, #tpu.memory_space<vmem>>, vector<8x16xf32>
    %c0_2 = arith.constant 0 : index
    %c0_3 = arith.constant 0 : index
    %4 = vector.load %arg3[%c0_2, %c0_3] : memref<8x16xbf16, #tpu.memory_space<vmem>>, vector<8x16xbf16>
    %5 = arith.extf %4 : vector<8x16xbf16> to vector<8x16xf32>
    %6 = math.absf %3 : vector<8x16xf32>
    %cst = arith.constant 0.000000e+00 : f32
    %7 = vector.broadcast %cst : f32 to vector<8x16xf32>
    %8 = arith.subf %7, %6 : vector<8x16xf32>
    %9 = math.exp %8 : vector<8x16xf32>
    %cst_4 = arith.constant 1.000000e+00 : f32
    %10 = vector.broadcast %cst_4 : f32 to vector<8x16xf32>
    %11 = arith.addf %10, %9 : vector<8x16xf32>
    %cst_5 = arith.constant 1.000000e+00 : f32
    %12 = vector.broadcast %cst_5 : f32 to vector<8x16xf32>
    %13 = arith.divf %12, %11 : vector<8x16xf32>
    %cst_6 = arith.constant 0.000000e+00 : f32
    %14 = vector.broadcast %cst_6 : f32 to vector<8x16xf32>
    %15 = arith.cmpf oge, %3, %14 : vector<8x16xf32>
    %cst_7 = arith.constant 1.000000e+00 : f32
    %16 = vector.broadcast %cst_7 : f32 to vector<8x16xf32>
    %17 = arith.subf %16, %13 : vector<8x16xf32>
    %18 = arith.select %15, %13, %17 : vector<8x16xi1>, vector<8x16xf32>
    %cst_8 = arith.constant 1.500000e+00 : f32
    %19 = vector.broadcast %cst_8 : f32 to vector<8x16xf32>
    %20 = arith.mulf %5, %19 : vector<8x16xf32>
    %cst_9 = arith.constant 5.000000e-01 : f32
    %21 = vector.broadcast %cst_9 : f32 to vector<8x16xf32>
    %22 = arith.addf %21, %20 : vector<8x16xf32>
    %23 = arith.mulf %22, %18 : vector<8x16xf32>
    %24 = arith.mulf %23, %5 : vector<8x16xf32>
    %25 = arith.addf %18, %5 : vector<8x16xf32>
    %26 = arith.mulf %22, %25 : vector<8x16xf32>
    %27 = arith.subf %26, %24 : vector<8x16xf32>
    %c0_10 = arith.constant 0 : index
    %c0_11 = arith.constant 0 : index
    %28 = vector.load %arg5[%c0_10, %c0_11] : memref<8x1xf32, #tpu.memory_space<vmem>>, vector<8x1xf32>
    %cst_12 = arith.constant dense<0.000000e+00> : vector<8xf32>
    %29 = vector.multi_reduction <add>, %24, %cst_12 [1] : vector<8x16xf32> to vector<8xf32>
    %30 = vector.shape_cast %29 : vector<8xf32> to vector<8x1xf32>
    %31 = arith.addf %28, %30 : vector<8x1xf32>
    %c0_13 = arith.constant 0 : index
    %c0_14 = arith.constant 0 : index
    %32 = vector.load %arg5[%c0_13, %c0_14] : memref<8x1xf32, #tpu.memory_space<vmem>>, vector<8x1xf32>
    tpu.vector_store %arg5[%c0_13, %c0_14], %31 {strides = array<i32>} : memref<8x1xf32, #tpu.memory_space<vmem>>, vector<8x1xf32>,
    %c0_15 = arith.constant 0 : index
    %c0_16 = arith.constant 0 : index
    %33 = vector.load %arg6[%c0_15, %c0_16] : memref<8x1xf32, #tpu.memory_space<vmem>>, vector<8x1xf32>
    %cst_17 = arith.constant dense<0.000000e+00> : vector<8xf32>
    %34 = vector.multi_reduction <add>, %27, %cst_17 [1] : vector<8x16xf32> to vector<8xf32>
    %35 = vector.shape_cast %34 : vector<8xf32> to vector<8x1xf32>
    %36 = arith.addf %33, %35 : vector<8x1xf32>
    %c0_18 = arith.constant 0 : index
    %c0_19 = arith.constant 0 : index
    %37 = vector.load %arg6[%c0_18, %c0_19] : memref<8x1xf32, #tpu.memory_space<vmem>>, vector<8x1xf32>
    tpu.vector_store %arg6[%c0_18, %c0_19], %36 {strides = array<i32>} : memref<8x1xf32, #tpu.memory_space<vmem>>, vector<8x1xf32>,
    %c0_i32_20 = arith.constant 0 : i32
    %38 = arith.cmpi eq, %arg1, %c0_i32_20 : i32
    %39 = arith.extui %38 : i1 to i32
    %c0_i32_21 = arith.constant 0 : i32
    %40 = arith.cmpi ne, %39, %c0_i32_21 : i32
    scf.if %40 {
      %c0_22 = arith.constant 0 : index
      %c0_23 = arith.constant 0 : index
      %41 = vector.load %arg5[%c0_22, %c0_23] : memref<8x1xf32, #tpu.memory_space<vmem>>, vector<8x1xf32>
      %c0_24 = arith.constant 0 : index
      %c0_25 = arith.constant 0 : index
      %42 = vector.load %arg6[%c0_24, %c0_25] : memref<8x1xf32, #tpu.memory_space<vmem>>, vector<8x1xf32>
      %cst_26 = arith.constant 9.99999993E-9 : f32
      %43 = vector.broadcast %cst_26 : f32 to vector<8x1xf32>
      %44 = arith.addf %42, %43 : vector<8x1xf32>
      %45 = arith.divf %41, %44 : vector<8x1xf32>
      %c0_27 = arith.constant 0 : index
      %c0_28 = arith.constant 0 : index
      %46 = vector.load %arg4[%c0_27, %c0_28] : memref<8x1xf32, #tpu.memory_space<vmem>>, vector<8x1xf32>
      tpu.vector_store %arg4[%c0_27, %c0_28], %45 {strides = array<i32>} : memref<8x1xf32, #tpu.memory_space<vmem>>, vector<8x1xf32>,
    } else {
    }
    return
  }
  func.func @transform_0(%arg0: i32, %arg1: i32) -> (i32, i32) {
    %c0_i32 = arith.constant 0 : i32
    return %arg0, %arg1 : i32, i32
  }
  func.func @transform_1(%arg0: i32, %arg1: i32) -> (i32, i32) {
    %c0_i32 = arith.constant 0 : i32
    return %arg0, %arg1 : i32, i32
  }
  func.func @transform_2(%arg0: i32, %arg1: i32) -> (i32, i32) {
    %c0_i32 = arith.constant 0 : i32
    %c0_i32_0 = arith.constant 0 : i32
    return %arg0, %c0_i32 : i32, i32
  }
}

</mosaic_0001>

<llo_original>
// kernel: tpu_custom_call.1
$region0: #{tpu_custom_call.1}
  #allocation0 [shape = 'u32[]', space=smem, size = 0x4, offset = 0x4, fixed_abs, tag = 'smem constant byte address 0x4 - core index']
  #allocation1 [shape = 'u32[72,128]{1,0:T(1,128)}', space=vmem, size = 0x9000, scoped, tag = 'internal scratch']
  #allocation2 [shape = 'f32[8,1]{1,0:T(8,128)}', space=vmem, size = 0x1000, scoped, tag = 'scratch operand']
  #allocation3 [shape = 'f32[8,1]{1,0:T(8,128)}', space=vmem, size = 0x1000, scoped, tag = 'scratch operand']
  %s0 = inlined_call_operand.hbm [shape: f32[8,16], index: 0, kind: input, shape index: {}]
  %s1 = inlined_call_operand.hbm [shape: bf16[8,16], index: 1, kind: input, shape index: {}]
  %s2 = inlined_call_operand.vmem [shape: f32[8,1], index: 2, kind: output, shape index: {}]
  %s3 = sld [smem:[#allocation0]]
  $region34: #{tpu_custom_call.1} parent=0
    _
  %s5 = ssub.s32 1, %s3
  %s6 = scalar_select 0, %s5, %s3
  $region1: #{tpu_custom_call.1} parent=0
    #allocation4 [shape = 'u8[4096]{0}', space=vmem, size = 0x1000, scoped, tag = 'input window, operand 0, single buffered']
    #allocation5 [shape = 's32[1]{0}', space=sflag, size = 0x4, scoped, tag = 'scoped memory for tpu_custom_call.1']
    #allocation6 [shape = 'u8[2048]{0}', space=vmem, size = 0x800, scoped, tag = 'input window, operand 1, single buffered']
    #allocation7 [shape = 's32[1]{0}', space=sflag, size = 0x4, scoped, tag = 'scoped memory for tpu_custom_call.1']
    %7 = vsyncpa [#allocation5], 0
    %8 = vsyncpa [#allocation7], 0
    // Predicated region
    $region2: #{tpu_custom_call.1} parent=1 // pred_check
      _
    $region3: #{tpu_custom_call.1} parent=1 // pred_check_branch
      %10 = sbr.rel (0) target = $region5
    $region4: #{tpu_custom_call.1} parent=1 // pred_region
      %12 = vsyncadd [#allocation5], 0
      %s14 = sshll.u32 %s0, 4
      %s15 = int_to_ptr.hbm [resolvable:$true] %s14
      %s16 = sshll.u32 [#allocation4], 4
      %s17 = int_to_ptr.vmem [resolvable:$true] %s16
      %19 = dma.hbm_to_vmem [thread:$0]  %s15, 128, %s17, [#allocation5]
    $region5: #{tpu_custom_call.1} parent=1 // pred_fallthru
      _
    // Predicated region
    $region6: #{tpu_custom_call.1} parent=1 // pred_check
      _
    $region7: #{tpu_custom_call.1} parent=1 // pred_check_branch
      %21 = sbr.rel (0) target = $region9
    $region8: #{tpu_custom_call.1} parent=1 // pred_region
      %23 = vsyncadd [#allocation7], 0
      %s25 = sshll.u32 %s1, 4
      %s26 = int_to_ptr.hbm [resolvable:$true] %s25
      %s27 = sshll.u32 [#allocation6], 4
      %s28 = int_to_ptr.vmem [resolvable:$true] %s27
      %30 = dma.hbm_to_vmem [thread:$0]  %s26, 64, %s28, [#allocation7]
    $region9: #{tpu_custom_call.1} parent=1 // pred_fallthru
      _
    // Predicated region
    $region10: #{tpu_custom_call.1} parent=1 // pred_check
      _
    $region11: #{tpu_custom_call.1} parent=1 // pred_check_branch
      %32 = sbr.rel (0) target = $region13
    $region12: #{tpu_custom_call.1} parent=1 // pred_region
      %34 = dma.done [#allocation5], 128
    $region13: #{tpu_custom_call.1} parent=1 // pred_fallthru
      _
    // Predicated region
    $region14: #{tpu_custom_call.1} parent=1 // pred_check
      _
    $region15: #{tpu_custom_call.1} parent=1 // pred_check_branch
      %36 = sbr.rel (0) target = $region17
    $region16: #{tpu_custom_call.1} parent=1 // pred_region
      %38 = dma.done [#allocation7], 64
    $region17: #{tpu_custom_call.1} parent=1 // pred_fallthru
      _
    %p39 = scmp.eq.s32.totalorder 0, 0
    // Predicated region
    $region18: #{tpu_custom_call.1} parent=1 // pred_check
      %p40 = pneg %p39
    $region19: #{tpu_custom_call.1} parent=1 // pred_check_branch
      %42 = sbr.rel (%p40) target = $region21
    $region20: #{tpu_custom_call.1} parent=1 // pred_region
      %vm43 = vcmask 7168
      %44 = vst.msk [vmem:[#allocation2] sm:$0xff] %vm43, 0.0
      %45 = vst.msk [vmem:[#allocation3] sm:$0xff] %vm43, 0.0
    $region21: #{tpu_custom_call.1} parent=1 // pred_fallthru
      _
    %v46 = vld [vmem:[#allocation4] sm:$0xff]
    %v47 = vld [vmem:[#allocation6] sm:$0xf]
    %v48 = vunpack.c.l.bf16 %v47
    %v49 = vand.u32 2147483647, %v46
    %v50 = vsub.f32 0.0, %v49
    %v51 = vmul.f32 %v50, 1.442695
    %v52 = vpow.pop %v51
    %v53 = vadd.f32 %v52, 1.0
    %v54 = vrcp.pop %v53
    %v55 = vmul.f32 %v53, %v54
    %v56 = vsub.f32 1.0, %v55
    %v57 = vmul.f32 %v54, %v56
    %v58 = vadd.f32 %v54, %v57
    %vm59 = vweird.f32 %v53
    %vm60 = vweird.f32 %v54
    %vm61 = vmor %vm59, %vm60
    %v62 = vsel %vm61, %v54, %v58
    %v63 = vand.u32 2147483647, %v53
    %vm64 = vcmp.eq.f32.partialorder %v63, 8.507059e+37
    %v65 = vand.u32 %v53, 2147483648
    %v66 = vor.u32 1.1754944e-38, %v65
    %v67 = vsel %vm64, %v66, %v62
    %v68 = vmul.f32 1.0, %v67
    %vm69 = vcmp.ge.f32.partialorder %v46, 0.0
    %v70 = vsub.f32 1.0, %v68
    %v71 = vsel %vm69, %v68, %v70
    %v72 = vmul.f32 %v48, 1.5
    %v73 = vadd.f32 %v72, 0.5
    %v74 = vmul.f32 %v73, %v71
    %v75 = vmul.f32 %v74, %v48
    %v76 = vadd.f32 %v71, %v48
    %v77 = vmul.f32 %v73, %v76
    %v78 = vsub.f32 %v77, %v75
    %v79 = vld [vmem:[#allocation2] sm:$0xff]
    %vm80 = vcmask 130048
    %v81 = vsel %vm80, %v75, 0.0
    %82 = vadd.xlane.f32.xlu0 %v81
    %v83 = vpop.xlane.xlu0 %82
    %v84 = vadd.f32 %v79, %v83
    %vm85 = vcmask 7168
    %86 = vst.msk [vmem:[#allocation2] sm:$0xff] %vm85, %v84
    %v87 = vld [vmem:[#allocation3] sm:$0xff]
    %v88 = vsel %vm80, %v78, 0.0
    %89 = vadd.xlane.f32.xlu0 %v88
    %v90 = vpop.xlane.xlu0 %89
    %v91 = vadd.f32 %v87, %v90
    %92 = vst.msk [vmem:[#allocation3] sm:$0xff] %vm85, %v91
    // Predicated region
    $region22: #{tpu_custom_call.1} parent=1 // pred_check
      %p93 = pneg %p39
    $region23: #{tpu_custom_call.1} parent=1 // pred_check_branch
      %95 = sbr.rel (%p93) target = $region25
    $region24: #{tpu_custom_call.1} parent=1 // pred_region
      %v96 = vld [vmem:[#allocation2] sm:$0xff]
      %v97 = vld [vmem:[#allocation3] sm:$0xff]
      %v98 = vadd.f32 %v97, 1e-08
      %v99 = vrcp.pop %v98
      %v100 = vmul.f32 %v98, %v99
      %v101 = vsub.f32 1.0, %v100
      %v102 = vmul.f32 %v99, %v101
      %v103 = vadd.f32 %v99, %v102
      %vm104 = vweird.f32 %v98
      %vm105 = vweird.f32 %v99
      %vm106 = vmor %vm104, %vm105
      %v107 = vsel %vm106, %v99, %v103
      %v108 = vand.u32 2147483647, %v98
      %vm109 = vcmp.eq.f32.partialorder %v108, 8.507059e+37
      %v110 = vand.u32 %v98, 2147483648
      %v111 = vor.u32 1.1754944e-38, %v110
      %v112 = vsel %vm109, %v111, %v107
      %v113 = vmul.f32 %v96, %v112
      %114 = vst.msk [vmem:[%s2] sm:$0xff] %vm85, %v113
    $region25: #{tpu_custom_call.1} parent=1 // pred_fallthru
      _
    // Predicated region
    $region26: #{tpu_custom_call.1} parent=1 // pred_check
      _
    $region27: #{tpu_custom_call.1} parent=1 // pred_check_branch
      %116 = sbr.rel (0) target = $region29
    $region28: #{tpu_custom_call.1} parent=1 // pred_region
      _
    $region29: #{tpu_custom_call.1} parent=1 // pred_fallthru
      _
    // Predicated region
    $region30: #{tpu_custom_call.1} parent=1 // pred_check
      _
    $region31: #{tpu_custom_call.1} parent=1 // pred_check_branch
      %118 = sbr.rel (0) target = $region33
    $region32: #{tpu_custom_call.1} parent=1 // pred_region
      _
    $region33: #{tpu_custom_call.1} parent=1 // pred_fallthru
      _
    %119 = vsyncpa [#allocation5], 1
    %120 = vsyncpa [#allocation7], 1

</llo_original>
